<compile_context>
chip_gen: v5e
topology: v5e:2x2
jax: 0.10.0
libtpu: 0.0.40
codegen_flags: <defaults>
</compile_context>

<pallas_src>
import functools

import numpy as np
import jax
import jax.numpy as jnp
from jax import lax
from jax.experimental import pallas as pl
from jax.experimental.pallas import tpu as pltpu


def _round_up(n: int, m: int) -> int:
    return (n + m - 1) // m * m


def _make_kernel(F: int, unroll: int):
    """Kernel factory: F (fields per row) and unroll factor are static."""

    def kernel(idx_ref,      # SMEM  (Bp*F,) int32 pre-offset, pre-clipped ids (scalar prefetch)
               table_ref,    # VMEM  (V, D)  embedding table, resident across the whole grid
               bias_ref,     # VMEM  (1, D)  bias
               out_ref):     # VMEM  (TB, D) output block for this batch tile
        TB, _ = out_ref.shape
        base = pl.program_id(0) * TB                      # first (padded) batch row of this tile
        # Hoisted out of the row loop (review #10): one load, reused as the
        # accumulator init so the bias add costs nothing extra per row.
        bias_f32 = bias_ref[...].astype(jnp.float32)      # (1, D)

        def body(g, carry):
            b0 = pl.multiple_of(g * unroll, unroll)       # aligned group start
            for u in range(unroll):                       # static unroll -> scheduler visibility
                b = b0 + u
                row = (base + b) * F
                acc = bias_f32                            # (1, D), starts at bias
                for f in range(F):                        # F tiny & static -> unrolled
                    gid = idx_ref[row + f]                # scalar id from SMEM
                    # Gather = dynamic-sublane VMEM vector load (no DMA).
                    acc = acc + table_ref[pl.ds(gid, 1), :].astype(jnp.float32)
                out_ref[pl.ds(b, 1), :] = acc.astype(out_ref.dtype)
            return carry

        lax.fori_loop(0, TB // unroll, body, 0)

    return kernel


def features_linear(x_idx, offsets, table, bias, *, tb=256, interpret=False):
    """out[b] = sum_f table[x[b, f] + offsets[f]] + bias  ->  (B, output_dim) float32."""
    B, F = x_idx.shape
    V, D = table.shape

    # --- ids prepared in the wrapper (vectorized XLA), review #9 -------------
    ids = x_idx.astype(jnp.int32) + offsets.reshape(1, F).astype(jnp.int32)
    ids = jnp.clip(ids, 0, V - 1)           # clamp like jnp.take (safety for bad inputs)

    # --- batch tiling (review #6) --------------------------------------------
    tb = int(tb)
    tb = _round_up(min(tb, _round_up(B, 8)), 8)     # big tile, but never > 8-aligned batch
    Bp = _round_up(B, tb)
    ids = jnp.pad(ids, ((0, Bp - B), (0, 0)))       # pad rows gather row 0 (valid), sliced off below
    ids_flat = ids.reshape(-1)                      # 1-D int32 -> lean SMEM padding
    unroll = 8                                      # tb is a multiple of 8

    bias2d = jnp.asarray(bias).reshape(1, D)        # native dtype; upcast happens in-kernel

    # --- VMEM budget + scoped limit (review #2-#4) ----------------------------
    itemsize = jnp.dtype(table.dtype).itemsize
    table_block = _round_up(V, 8) * _round_up(D, 128) * itemsize     # padded VMEM layout
    out_block = tb * _round_up(D, 128) * 4
    bias_block = 8 * _round_up(D, 128) * jnp.dtype(bias2d.dtype).itemsize
    # 2x: the pipeline may double-buffer each operand even though the table's
    # block index never changes (it is only fetched once).
    need = 2 * table_block + 2 * out_block + 2 * bias_block + (2 << 20)
    try:
        phys_vmem = int(pltpu.get_tpu_info().vmem_capacity_bytes)    # 64 MiB v7x, 128 MiB v5e/v6e
    except Exception:
        phys_vmem = 64 << 20                                         # conservative (v7x per-core)
    budget = int(phys_vmem * 0.75)                                   # headroom for blocks/buffers
    if need > budget:
        # TODO(synk): HBM-resident table + deep-pipelined DMA row-gather fallback
        # for vocabularies that do not fit the per-core VMEM budget.
        raise NotImplementedError(
            f"Embedding table needs ~{need >> 20} MiB VMEM but per-core budget is "
            f"{budget >> 20} MiB; use an HBM-resident gather path for this vocabulary.")
    vmem_limit = int(min(phys_vmem, max(32 << 20, need)))

    grid_spec = pltpu.PrefetchScalarGridSpec(
        num_scalar_prefetch=1,                               # ids -> SMEM
        grid=(Bp // tb,),
        in_specs=[
            # Table: whole array, constant index_map => fetched once, VMEM-resident.
            pl.BlockSpec((V, D), lambda i, ids_ref: (0, 0)),
            # Bias: tiny (1, D) block, resident.
            pl.BlockSpec((1, D), lambda i, ids_ref: (0, 0)),
        ],
        out_specs=pl.BlockSpec((tb, D), lambda i, ids_ref: (i, 0)),
    )

    out = pl.pallas_call(
        _make_kernel(F, unroll),
        out_shape=jax.ShapeDtypeStruct((Bp, D), jnp.float32),
        grid_spec=grid_spec,
        compiler_params=pltpu.CompilerParams(
            dimension_semantics=("parallel",),               # v7x megacore splits batch tiles
            vmem_limit_bytes=vmem_limit,
        ),
        interpret=interpret,
    )(ids_flat, table, bias2d)
    return out[:B]


if __name__ == "__main__":
    # Module config (small, synthetic)
    field_dims = (3, 4, 5, 6)          # sum = 18 vocab rows
    output_dim = 1
    B = 16
    F = len(field_dims)
    V = int(sum(field_dims))

    key = jax.random.PRNGKey(0)
    k_tab, *k_fields = jax.random.split(key, 1 + F)

    # Parameters (deterministic, matching __init__ shapes)
    table = jax.random.normal(k_tab, (V, output_dim), dtype=jnp.float32) * 0.01
    bias = jnp.zeros((output_dim,), dtype=jnp.float32)
    offsets = jnp.asarray(
        np.array((0, *np.cumsum(field_dims)[:-1]), dtype=np.int32)
    )

    # Inputs: per-field indices within each field's vocab range
    cols = [
        jax.random.randint(k_fields[f], (B, 1), 0, field_dims[f], dtype=jnp.int32)
        for f in range(F)
    ]
    x = jnp.concatenate(cols, axis=1)  # (B, F) int32

    out = jax.block_until_ready(features_linear(x, offsets, table, bias))

    # Pure-JAX reference check
    ids = x + offsets[None, :]                                       # (B, F)
    ref = jnp.take(table, ids, axis=0).sum(axis=1) + bias[None, :]   # (B, D)
    assert out.shape == (B, output_dim)
    np.testing.assert_allclose(np.asarray(out), np.asarray(ref), rtol=1e-5, atol=1e-6)

    print("KERNEL_OK")
</pallas_src>

<mosaic_0001>
module attributes {stable_mosaic.version = 11 : i64} {
  func.func @kernel(%arg0: i32, %arg1: memref<64xi32, #tpu.memory_space<smem>>, %arg2: memref<18x1xf32, #tpu.memory_space<vmem>>, %arg3: memref<1x1xf32, #tpu.memory_space<vmem>>, %arg4: memref<16x1xf32, #tpu.memory_space<vmem>>) attributes {dimension_semantics = [#tpu.dimension_semantics<parallel>], iteration_bounds = array<i64: 1>, scalar_prefetch = 1 : i64, scratch_operands = 0 : i64, tpu.core_type = #tpu.core_type<tc>, window_params = [{pipeline_mode = #tpu.pipeline_mode<synchronous>, transform_indices = @transform_0, window_bounds = array<i64: 18, 1>}, {pipeline_mode = #tpu.pipeline_mode<synchronous>, transform_indices = @transform_1, window_bounds = array<i64: 1, 1>}, {transform_indices = @transform_2, window_bounds = array<i64: 16, 1>}]} {
    %c16_i32 = arith.constant 16 : i32
    %0 = arith.muli %arg0, %c16_i32 : i32
    %c0 = arith.constant 0 : index
    %c0_0 = arith.constant 0 : index
    %1 = vector.load %arg3[%c0, %c0_0] : memref<1x1xf32, #tpu.memory_space<vmem>>, vector<1x1xf32>
    %c0_i32 = arith.constant 0 : i32
    %c2_i32 = arith.constant 2 : i32
    %2 = arith.addi %c0_i32, %c2_i32 : i32
    %c1_i32 = arith.constant 1 : i32
    scf.for %arg5 = %c0_i32 to %2 step %c1_i32  : i32 {
      %c8_i32 = arith.constant 8 : i32
      %3 = arith.muli %arg5, %c8_i32 : i32
      %4 = tpu.assume_multiple %3, 8 : i32
      %c0_i32_2 = arith.constant 0 : i32
      %5 = arith.addi %4, %c0_i32_2 : i32
      %6 = arith.addi %0, %5 : i32
      %c4_i32 = arith.constant 4 : i32
      %7 = arith.muli %6, %c4_i32 : i32
      %c0_i32_3 = arith.constant 0 : i32
      %8 = arith.addi %7, %c0_i32_3 : i32
      %9 = arith.index_cast %8 : i32 to index
      %10 = memref.load %arg1[%9] : memref<64xi32, #tpu.memory_space<smem>>
      %11 = arith.index_cast %10 : i32 to index
      %c0_4 = arith.constant 0 : index
      %12 = vector.load %arg2[%11, %c0_4] : memref<18x1xf32, #tpu.memory_space<vmem>>, vector<1x1xf32>
      %13 = arith.addf %1, %12 : vector<1x1xf32>
      %c1_i32_5 = arith.constant 1 : i32
      %14 = arith.addi %7, %c1_i32_5 : i32
      %15 = arith.index_cast %14 : i32 to index
      %16 = memref.load %arg1[%15] : memref<64xi32, #tpu.memory_space<smem>>
      %17 = arith.index_cast %16 : i32 to index
      %c0_6 = arith.constant 0 : index
      %18 = vector.load %arg2[%17, %c0_6] : memref<18x1xf32, #tpu.memory_space<vmem>>, vector<1x1xf32>
      %19 = arith.addf %13, %18 : vector<1x1xf32>
      %c2_i32_7 = arith.constant 2 : i32
      %20 = arith.addi %7, %c2_i32_7 : i32
      %21 = arith.index_cast %20 : i32 to index
      %22 = memref.load %arg1[%21] : memref<64xi32, #tpu.memory_space<smem>>
      %23 = arith.index_cast %22 : i32 to index
      %c0_8 = arith.constant 0 : index
      %24 = vector.load %arg2[%23, %c0_8] : memref<18x1xf32, #tpu.memory_space<vmem>>, vector<1x1xf32>
      %25 = arith.addf %19, %24 : vector<1x1xf32>
      %c3_i32 = arith.constant 3 : i32
      %26 = arith.addi %7, %c3_i32 : i32
      %27 = arith.index_cast %26 : i32 to index
      %28 = memref.load %arg1[%27] : memref<64xi32, #tpu.memory_space<smem>>
      %29 = arith.index_cast %28 : i32 to index
      %c0_9 = arith.constant 0 : index
      %30 = vector.load %arg2[%29, %c0_9] : memref<18x1xf32, #tpu.memory_space<vmem>>, vector<1x1xf32>
      %31 = arith.addf %25, %30 : vector<1x1xf32>
      %32 = arith.index_cast %5 : i32 to index
      %c0_10 = arith.constant 0 : index
      %33 = vector.load %arg4[%32, %c0_10] : memref<16x1xf32, #tpu.memory_space<vmem>>, vector<1x1xf32>
      tpu.vector_store %arg4[%32, %c0_10], %31 {strides = array<i32>} : memref<16x1xf32, #tpu.memory_space<vmem>>, vector<1x1xf32>,
      %c1_i32_11 = arith.constant 1 : i32
      %34 = arith.addi %4, %c1_i32_11 : i32
      %35 = arith.addi %0, %34 : i32
      %c4_i32_12 = arith.constant 4 : i32
      %36 = arith.muli %35, %c4_i32_12 : i32
      %c0_i32_13 = arith.constant 0 : i32
      %37 = arith.addi %36, %c0_i32_13 : i32
      %38 = arith.index_cast %37 : i32 to index
      %39 = memref.load %arg1[%38] : memref<64xi32, #tpu.memory_space<smem>>
      %40 = arith.index_cast %39 : i32 to index
      %c0_14 = arith.constant 0 : index
      %41 = vector.load %arg2[%40, %c0_14] : memref<18x1xf32, #tpu.memory_space<vmem>>, vector<1x1xf32>
      %42 = arith.addf %1, %41 : vector<1x1xf32>
      %c1_i32_15 = arith.constant 1 : i32
      %43 = arith.addi %36, %c1_i32_15 : i32
      %44 = arith.index_cast %43 : i32 to index
      %45 = memref.load %arg1[%44] : memref<64xi32, #tpu.memory_space<smem>>
      %46 = arith.index_cast %45 : i32 to index
      %c0_16 = arith.constant 0 : index
      %47 = vector.load %arg2[%46, %c0_16] : memref<18x1xf32, #tpu.memory_space<vmem>>, vector<1x1xf32>
      %48 = arith.addf %42, %47 : vector<1x1xf32>
      %c2_i32_17 = arith.constant 2 : i32
      %49 = arith.addi %36, %c2_i32_17 : i32
      %50 = arith.index_cast %49 : i32 to index
      %51 = memref.load %arg1[%50] : memref<64xi32, #tpu.memory_space<smem>>
      %52 = arith.index_cast %51 : i32 to index
      %c0_18 = arith.constant 0 : index
      %53 = vector.load %arg2[%52, %c0_18] : memref<18x1xf32, #tpu.memory_space<vmem>>, vector<1x1xf32>
      %54 = arith.addf %48, %53 : vector<1x1xf32>
      %c3_i32_19 = arith.constant 3 : i32
      %55 = arith.addi %36, %c3_i32_19 : i32
      %56 = arith.index_cast %55 : i32 to index
      %57 = memref.load %arg1[%56] : memref<64xi32, #tpu.memory_space<smem>>
      %58 = arith.index_cast %57 : i32 to index
      %c0_20 = arith.constant 0 : index
      %59 = vector.load %arg2[%58, %c0_20] : memref<18x1xf32, #tpu.memory_space<vmem>>, vector<1x1xf32>
      %60 = arith.addf %54, %59 : vector<1x1xf32>
      %61 = arith.index_cast %34 : i32 to index
      %c0_21 = arith.constant 0 : index
      %62 = vector.load %arg4[%61, %c0_21] : memref<16x1xf32, #tpu.memory_space<vmem>>, vector<1x1xf32>
      tpu.vector_store %arg4[%61, %c0_21], %60 {strides = array<i32>} : memref<16x1xf32, #tpu.memory_space<vmem>>, vector<1x1xf32>,
      %c2_i32_22 = arith.constant 2 : i32
      %63 = arith.addi %4, %c2_i32_22 : i32
      %64 = arith.addi %0, %63 : i32
      %c4_i32_23 = arith.constant 4 : i32
      %65 = arith.muli %64, %c4_i32_23 : i32
      %c0_i32_24 = arith.constant 0 : i32
      %66 = arith.addi %65, %c0_i32_24 : i32
      %67 = arith.index_cast %66 : i32 to index
      %68 = memref.load %arg1[%67] : memref<64xi32, #tpu.memory_space<smem>>
      %69 = arith.index_cast %68 : i32 to index
      %c0_25 = arith.constant 0 : index
      %70 = vector.load %arg2[%69, %c0_25] : memref<18x1xf32, #tpu.memory_space<vmem>>, vector<1x1xf32>
      %71 = arith.addf %1, %70 : vector<1x1xf32>
      %c1_i32_26 = arith.constant 1 : i32
      %72 = arith.addi %65, %c1_i32_26 : i32
      %73 = arith.index_cast %72 : i32 to index
      %74 = memref.load %arg1[%73] : memref<64xi32, #tpu.memory_space<smem>>
      %75 = arith.index_cast %74 : i32 to index
      %c0_27 = arith.constant 0 : index
      %76 = vector.load %arg2[%75, %c0_27] : memref<18x1xf32, #tpu.memory_space<vmem>>, vector<1x1xf32>
      %77 = arith.addf %71, %76 : vector<1x1xf32>
      %c2_i32_28 = arith.constant 2 : i32
      %78 = arith.addi %65, %c2_i32_28 : i32
      %79 = arith.index_cast %78 : i32 to index
      %80 = memref.load %arg1[%79] : memref<64xi32, #tpu.memory_space<smem>>
      %81 = arith.index_cast %80 : i32 to index
      %c0_29 = arith.constant 0 : index
      %82 = vector.load %arg2[%81, %c0_29] : memref<18x1xf32, #tpu.memory_space<vmem>>, vector<1x1xf32>
      %83 = arith.addf %77, %82 : vector<1x1xf32>
      %c3_i32_30 = arith.constant 3 : i32
      %84 = arith.addi %65, %c3_i32_30 : i32
      %85 = arith.index_cast %84 : i32 to index
      %86 = memref.load %arg1[%85] : memref<64xi32, #tpu.memory_space<smem>>
      %87 = arith.index_cast %86 : i32 to index
      %c0_31 = arith.constant 0 : index
      %88 = vector.load %arg2[%87, %c0_31] : memref<18x1xf32, #tpu.memory_space<vmem>>, vector<1x1xf32>
      %89 = arith.addf %83, %88 : vector<1x1xf32>
      %90 = arith.index_cast %63 : i32 to index
      %c0_32 = arith.constant 0 : index
      %91 = vector.load %arg4[%90, %c0_32] : memref<16x1xf32, #tpu.memory_space<vmem>>, vector<1x1xf32>
      tpu.vector_store %arg4[%90, %c0_32], %89 {strides = array<i32>} : memref<16x1xf32, #tpu.memory_space<vmem>>, vector<1x1xf32>,
      %c3_i32_33 = arith.constant 3 : i32
      %92 = arith.addi %4, %c3_i32_33 : i32
      %93 = arith.addi %0, %92 : i32
      %c4_i32_34 = arith.constant 4 : i32
      %94 = arith.muli %93, %c4_i32_34 : i32
      %c0_i32_35 = arith.constant 0 : i32
      %95 = arith.addi %94, %c0_i32_35 : i32
      %96 = arith.index_cast %95 : i32 to index
      %97 = memref.load %arg1[%96] : memref<64xi32, #tpu.memory_space<smem>>
      %98 = arith.index_cast %97 : i32 to index
      %c0_36 = arith.constant 0 : index
      %99 = vector.load %arg2[%98, %c0_36] : memref<18x1xf32, #tpu.memory_space<vmem>>, vector<1x1xf32>
      %100 = arith.addf %1, %99 : vector<1x1xf32>
      %c1_i32_37 = arith.constant 1 : i32
      %101 = arith.addi %94, %c1_i32_37 : i32
      %102 = arith.index_cast %101 : i32 to index
      %103 = memref.load %arg1[%102] : memref<64xi32, #tpu.memory_space<smem>>
      %104 = arith.index_cast %103 : i32 to index
      %c0_38 = arith.constant 0 : index
      %105 = vector.load %arg2[%104, %c0_38] : memref<18x1xf32, #tpu.memory_space<vmem>>, vector<1x1xf32>
      %106 = arith.addf %100, %105 : vector<1x1xf32>
      %c2_i32_39 = arith.constant 2 : i32
      %107 = arith.addi %94, %c2_i32_39 : i32
      %108 = arith.index_cast %107 : i32 to index
      %109 = memref.load %arg1[%108] : memref<64xi32, #tpu.memory_space<smem>>
      %110 = arith.index_cast %109 : i32 to index
      %c0_40 = arith.constant 0 : index
      %111 = vector.load %arg2[%110, %c0_40] : memref<18x1xf32, #tpu.memory_space<vmem>>, vector<1x1xf32>
      %112 = arith.addf %106, %111 : vector<1x1xf32>
      %c3_i32_41 = arith.constant 3 : i32
      %113 = arith.addi %94, %c3_i32_41 : i32
      %114 = arith.index_cast %113 : i32 to index
      %115 = memref.load %arg1[%114] : memref<64xi32, #tpu.memory_space<smem>>
      %116 = arith.index_cast %115 : i32 to index
      %c0_42 = arith.constant 0 : index
      %117 = vector.load %arg2[%116, %c0_42] : memref<18x1xf32, #tpu.memory_space<vmem>>, vector<1x1xf32>
      %118 = arith.addf %112, %117 : vector<1x1xf32>
      %119 = arith.index_cast %92 : i32 to index
      %c0_43 = arith.constant 0 : index
      %120 = vector.load %arg4[%119, %c0_43] : memref<16x1xf32, #tpu.memory_space<vmem>>, vector<1x1xf32>
      tpu.vector_store %arg4[%119, %c0_43], %118 {strides = array<i32>} : memref<16x1xf32, #tpu.memory_space<vmem>>, vector<1x1xf32>,
      %c4_i32_44 = arith.constant 4 : i32
      %121 = arith.addi %4, %c4_i32_44 : i32
      %122 = arith.addi %0, %121 : i32
      %c4_i32_45 = arith.constant 4 : i32
      %123 = arith.muli %122, %c4_i32_45 : i32
      %c0_i32_46 = arith.constant 0 : i32
      %124 = arith.addi %123, %c0_i32_46 : i32
      %125 = arith.index_cast %124 : i32 to index
      %126 = memref.load %arg1[%125] : memref<64xi32, #tpu.memory_space<smem>>
      %127 = arith.index_cast %126 : i32 to index
      %c0_47 = arith.constant 0 : index
      %128 = vector.load %arg2[%127, %c0_47] : memref<18x1xf32, #tpu.memory_space<vmem>>, vector<1x1xf32>
      %129 = arith.addf %1, %128 : vector<1x1xf32>
      %c1_i32_48 = arith.constant 1 : i32
      %130 = arith.addi %123, %c1_i32_48 : i32
      %131 = arith.index_cast %130 : i32 to index
      %132 = memref.load %arg1[%131] : memref<64xi32, #tpu.memory_space<smem>>
      %133 = arith.index_cast %132 : i32 to index
      %c0_49 = arith.constant 0 : index
      %134 = vector.load %arg2[%133, %c0_49] : memref<18x1xf32, #tpu.memory_space<vmem>>, vector<1x1xf32>
      %135 = arith.addf %129, %134 : vector<1x1xf32>
      %c2_i32_50 = arith.constant 2 : i32
      %136 = arith.addi %123, %c2_i32_50 : i32
      %137 = arith.index_cast %136 : i32 to index
      %138 = memref.load %arg1[%137] : memref<64xi32, #tpu.memory_space<smem>>
      %139 = arith.index_cast %138 : i32 to index
      %c0_51 = arith.constant 0 : index
      %140 = vector.load %arg2[%139, %c0_51] : memref<18x1xf32, #tpu.memory_space<vmem>>, vector<1x1xf32>
      %141 = arith.addf %135, %140 : vector<1x1xf32>
      %c3_i32_52 = arith.constant 3 : i32
      %142 = arith.addi %123, %c3_i32_52 : i32
      %143 = arith.index_cast %142 : i32 to index
      %144 = memref.load %arg1[%143] : memref<64xi32, #tpu.memory_space<smem>>
      %145 = arith.index_cast %144 : i32 to index
      %c0_53 = arith.constant 0 : index
      %146 = vector.load %arg2[%145, %c0_53] : memref<18x1xf32, #tpu.memory_space<vmem>>, vector<1x1xf32>
      %147 = arith.addf %141, %146 : vector<1x1xf32>
      %148 = arith.index_cast %121 : i32 to index
      %c0_54 = arith.constant 0 : index
      %149 = vector.load %arg4[%148, %c0_54] : memref<16x1xf32, #tpu.memory_space<vmem>>, vector<1x1xf32>
      tpu.vector_store %arg4[%148, %c0_54], %147 {strides = array<i32>} : memref<16x1xf32, #tpu.memory_space<vmem>>, vector<1x1xf32>,
      %c5_i32 = arith.constant 5 : i32
      %150 = arith.addi %4, %c5_i32 : i32
      %151 = arith.addi %0, %150 : i32
      %c4_i32_55 = arith.constant 4 : i32
      %152 = arith.muli %151, %c4_i32_55 : i32
      %c0_i32_56 = arith.constant 0 : i32
      %153 = arith.addi %152, %c0_i32_56 : i32
      %154 = arith.index_cast %153 : i32 to index
      %155 = memref.load %arg1[%154] : memref<64xi32, #tpu.memory_space<smem>>
      %156 = arith.index_cast %155 : i32 to index
      %c0_57 = arith.constant 0 : index
      %157 = vector.load %arg2[%156, %c0_57] : memref<18x1xf32, #tpu.memory_space<vmem>>, vector<1x1xf32>
      %158 = arith.addf %1, %157 : vector<1x1xf32>
      %c1_i32_58 = arith.constant 1 : i32
      %159 = arith.addi %152, %c1_i32_58 : i32
      %160 = arith.index_cast %159 : i32 to index
      %161 = memref.load %arg1[%160] : memref<64xi32, #tpu.memory_space<smem>>
      %162 = arith.index_cast %161 : i32 to index
      %c0_59 = arith.constant 0 : index
      %163 = vector.load %arg2[%162, %c0_59] : memref<18x1xf32, #tpu.memory_space<vmem>>, vector<1x1xf32>
      %164 = arith.addf %158, %163 : vector<1x1xf32>
      %c2_i32_60 = arith.constant 2 : i32
      %165 = arith.addi %152, %c2_i32_60 : i32
      %166 = arith.index_cast %165 : i32 to index
      %167 = memref.load %arg1[%166] : memref<64xi32, #tpu.memory_space<smem>>
      %168 = arith.index_cast %167 : i32 to index
      %c0_61 = arith.constant 0 : index
      %169 = vector.load %arg2[%168, %c0_61] : memref<18x1xf32, #tpu.memory_space<vmem>>, vector<1x1xf32>
      %170 = arith.addf %164, %169 : vector<1x1xf32>
      %c3_i32_62 = arith.constant 3 : i32
      %171 = arith.addi %152, %c3_i32_62 : i32
      %172 = arith.index_cast %171 : i32 to index
      %173 = memref.load %arg1[%172] : memref<64xi32, #tpu.memory_space<smem>>
      %174 = arith.index_cast %173 : i32 to index
      %c0_63 = arith.constant 0 : index
      %175 = vector.load %arg2[%174, %c0_63] : memref<18x1xf32, #tpu.memory_space<vmem>>, vector<1x1xf32>
      %176 = arith.addf %170, %175 : vector<1x1xf32>
      %177 = arith.index_cast %150 : i32 to index
      %c0_64 = arith.constant 0 : index
      %178 = vector.load %arg4[%177, %c0_64] : memref<16x1xf32, #tpu.memory_space<vmem>>, vector<1x1xf32>
      tpu.vector_store %arg4[%177, %c0_64], %176 {strides = array<i32>} : memref<16x1xf32, #tpu.memory_space<vmem>>, vector<1x1xf32>,
      %c6_i32 = arith.constant 6 : i32
      %179 = arith.addi %4, %c6_i32 : i32
      %180 = arith.addi %0, %179 : i32
      %c4_i32_65 = arith.constant 4 : i32
      %181 = arith.muli %180, %c4_i32_65 : i32
      %c0_i32_66 = arith.constant 0 : i32
      %182 = arith.addi %181, %c0_i32_66 : i32
      %183 = arith.index_cast %182 : i32 to index
      %184 = memref.load %arg1[%183] : memref<64xi32, #tpu.memory_space<smem>>
      %185 = arith.index_cast %184 : i32 to index
      %c0_67 = arith.constant 0 : index
      %186 = vector.load %arg2[%185, %c0_67] : memref<18x1xf32, #tpu.memory_space<vmem>>, vector<1x1xf32>
      %187 = arith.addf %1, %186 : vector<1x1xf32>
      %c1_i32_68 = arith.constant 1 : i32
      %188 = arith.addi %181, %c1_i32_68 : i32
      %189 = arith.index_cast %188 : i32 to index
      %190 = memref.load %arg1[%189] : memref<64xi32, #tpu.memory_space<smem>>
      %191 = arith.index_cast %190 : i32 to index
      %c0_69 = arith.constant 0 : index
      %192 = vector.load %arg2[%191, %c0_69] : memref<18x1xf32, #tpu.memory_space<vmem>>, vector<1x1xf32>
      %193 = arith.addf %187, %192 : vector<1x1xf32>
      %c2_i32_70 = arith.constant 2 : i32
      %194 = arith.addi %181, %c2_i32_70 : i32
      %195 = arith.index_cast %194 : i32 to index
      %196 = memref.load %arg1[%195] : memref<64xi32, #tpu.memory_space<smem>>
      %197 = arith.index_cast %196 : i32 to index
      %c0_71 = arith.constant 0 : index
      %198 = vector.load %arg2[%197, %c0_71] : memref<18x1xf32, #tpu.memory_space<vmem>>, vector<1x1xf32>
      %199 = arith.addf %193, %198 : vector<1x1xf32>
      %c3_i32_72 = arith.constant 3 : i32
      %200 = arith.addi %181, %c3_i32_72 : i32
      %201 = arith.index_cast %200 : i32 to index
      %202 = memref.load %arg1[%201] : memref<64xi32, #tpu.memory_space<smem>>
      %203 = arith.index_cast %202 : i32 to index
      %c0_73 = arith.constant 0 : index
      %204 = vector.load %arg2[%203, %c0_73] : memref<18x1xf32, #tpu.memory_space<vmem>>, vector<1x1xf32>
      %205 = arith.addf %199, %204 : vector<1x1xf32>
      %206 = arith.index_cast %179 : i32 to index
      %c0_74 = arith.constant 0 : index
      %207 = vector.load %arg4[%206, %c0_74] : memref<16x1xf32, #tpu.memory_space<vmem>>, vector<1x1xf32>
      tpu.vector_store %arg4[%206, %c0_74], %205 {strides = array<i32>} : memref<16x1xf32, #tpu.memory_space<vmem>>, vector<1x1xf32>,
      %c7_i32 = arith.constant 7 : i32
      %208 = arith.addi %4, %c7_i32 : i32
      %209 = arith.addi %0, %208 : i32
      %c4_i32_75 = arith.constant 4 : i32
      %210 = arith.muli %209, %c4_i32_75 : i32
      %c0_i32_76 = arith.constant 0 : i32
      %211 = arith.addi %210, %c0_i32_76 : i32
      %212 = arith.index_cast %211 : i32 to index
      %213 = memref.load %arg1[%212] : memref<64xi32, #tpu.memory_space<smem>>
      %214 = arith.index_cast %213 : i32 to index
      %c0_77 = arith.constant 0 : index
      %215 = vector.load %arg2[%214, %c0_77] : memref<18x1xf32, #tpu.memory_space<vmem>>, vector<1x1xf32>
      %216 = arith.addf %1, %215 : vector<1x1xf32>
      %c1_i32_78 = arith.constant 1 : i32
      %217 = arith.addi %210, %c1_i32_78 : i32
      %218 = arith.index_cast %217 : i32 to index
      %219 = memref.load %arg1[%218] : memref<64xi32, #tpu.memory_space<smem>>
      %220 = arith.index_cast %219 : i32 to index
      %c0_79 = arith.constant 0 : index
      %221 = vector.load %arg2[%220, %c0_79] : memref<18x1xf32, #tpu.memory_space<vmem>>, vector<1x1xf32>
      %222 = arith.addf %216, %221 : vector<1x1xf32>
      %c2_i32_80 = arith.constant 2 : i32
      %223 = arith.addi %210, %c2_i32_80 : i32
      %224 = arith.index_cast %223 : i32 to index
      %225 = memref.load %arg1[%224] : memref<64xi32, #tpu.memory_space<smem>>
      %226 = arith.index_cast %225 : i32 to index
      %c0_81 = arith.constant 0 : index
      %227 = vector.load %arg2[%226, %c0_81] : memref<18x1xf32, #tpu.memory_space<vmem>>, vector<1x1xf32>
      %228 = arith.addf %222, %227 : vector<1x1xf32>
      %c3_i32_82 = arith.constant 3 : i32
      %229 = arith.addi %210, %c3_i32_82 : i32
      %230 = arith.index_cast %229 : i32 to index
      %231 = memref.load %arg1[%230] : memref<64xi32, #tpu.memory_space<smem>>
      %232 = arith.index_cast %231 : i32 to index
      %c0_83 = arith.constant 0 : index
      %233 = vector.load %arg2[%232, %c0_83] : memref<18x1xf32, #tpu.memory_space<vmem>>, vector<1x1xf32>
      %234 = arith.addf %228, %233 : vector<1x1xf32>
      %235 = arith.index_cast %208 : i32 to index
      %c0_84 = arith.constant 0 : index
      %236 = vector.load %arg4[%235, %c0_84] : memref<16x1xf32, #tpu.memory_space<vmem>>, vector<1x1xf32>
      tpu.vector_store %arg4[%235, %c0_84], %234 {strides = array<i32>} : memref<16x1xf32, #tpu.memory_space<vmem>>, vector<1x1xf32>,
    }
    %c2_i32_1 = arith.constant 2 : i32
    return
  }
  func.func @transform_0(%arg0: i32, %arg1: memref<64xi32, #tpu.memory_space<smem>>) -> (i32, i32) {
    %c0_i32 = arith.constant 0 : i32
    %c0_i32_0 = arith.constant 0 : i32
    %c0_i32_1 = arith.constant 0 : i32
    return %c0_i32, %c0_i32_0 : i32, i32
  }
  func.func @transform_1(%arg0: i32, %arg1: memref<64xi32, #tpu.memory_space<smem>>) -> (i32, i32) {
    %c0_i32 = arith.constant 0 : i32
    %c0_i32_0 = arith.constant 0 : i32
    %c0_i32_1 = arith.constant 0 : i32
    return %c0_i32, %c0_i32_0 : i32, i32
  }
  func.func @transform_2(%arg0: i32, %arg1: memref<64xi32, #tpu.memory_space<smem>>) -> (i32, i32) {
    %c0_i32 = arith.constant 0 : i32
    %c0_i32_0 = arith.constant 0 : i32
    return %arg0, %c0_i32 : i32, i32
  }
}

</mosaic_0001>

<llo_original>
// kernel: tpu_custom_call.1
$region0: #{tpu_custom_call.1}
  #allocation0 [shape = 'u32[]', space=smem, size = 0x4, offset = 0x4, fixed_abs, tag = 'smem constant byte address 0x4 - core index']
  #allocation1 [shape = 'u32[72,128]{1,0:T(1,128)}', space=vmem, size = 0x9000, scoped, tag = 'internal scratch']
  #allocation2 [shape = 's32[1]{0}', space=sflag, size = 0x4, scoped, tag = 'scoped memory for tpu_custom_call.1']
  #allocation3 [shape = 'u8[512]{0}', space=smem, size = 0x200, scoped, tag = 'prefetched SMEM operand 0']
  #allocation4 [shape = 'f32[1,1]{1,0:T(1,128)S(1)}', space=vmem, size = 0x200, scoped, tag = 'scoped memory for tpu_custom_call.1']
  %s0 = inlined_call_operand.vmem [shape: s32[64], index: 0, kind: input, shape index: {}]
  %s1 = inlined_call_operand.vmem [shape: f32[18,1], index: 1, kind: input, shape index: {}]
  %s2 = inlined_call_operand.<no memory space> [shape: f32[1,1], index: 2, kind: input, shape index: {}]
  %s3 = inlined_call_operand.vmem [shape: f32[16,1], index: 3, kind: output, shape index: {}]
  %s4 = sld [smem:[#allocation0]]
  $region25: #{tpu_custom_call.1} parent=0
    _
  %s6 = ssub.s32 1, %s4
  %s7 = scalar_select 0, %s6, %s4
  %s9 = sshll.u32 %s0, 4
  %s10 = int_to_ptr.vmem [resolvable:$true] %s9
  %12 = dma.vmem_to_smem %s10, 16, [#allocation3], [#allocation2]
  %v13 = vstv %s2
  %14 = vst [vmem:[#allocation4] sm:$0x1] %v13
  %16 = dma.done [#allocation2], 16
  %17 = sfence
  // Predicated region
  $region2: #{tpu_custom_call.1} parent=0 // pred_check
    _
  $region3: #{tpu_custom_call.1} parent=0 // pred_check_branch
    %19 = sbr.rel (0) target = $region5
  $region4: #{tpu_custom_call.1} parent=0 // pred_region
    _
  $region5: #{tpu_custom_call.1} parent=0 // pred_fallthru
    _
  // Predicated region
  $region6: #{tpu_custom_call.1} parent=0 // pred_check
    _
  $region7: #{tpu_custom_call.1} parent=0 // pred_check_branch
    %21 = sbr.rel (0) target = $region9
  $region8: #{tpu_custom_call.1} parent=0 // pred_region
    _
  $region9: #{tpu_custom_call.1} parent=0 // pred_fallthru
    _
  %s22 = smul.u32 0, 16
  %v23 = vld [vmem:[#allocation4] sm:$0x1]
  loop: start=0, step=1, limit=2
  $region10: #{tpu_custom_call.1} parent=0 // loop_pre_header
    _
  $region11: #{tpu_custom_call.1} parent=0 // loop_header
    %s25 = sphi 0, %s29
    %p26 = scmp.ge.s32.totalorder %s25, 2
  $region12: #{tpu_custom_call.1} parent=0 // loop_header_branch
    %28 = sbr.rel (%p26) target = $region16
  $region13: #{tpu_custom_call.1} parent=0 // loop_body
    %s30 = smul.u32 %s25, 8
    %s31 = sadd.s32 %s22, %s30
    %s32 = smul.u32 %s31, 4
    %s33 = sld [smem:[#allocation3 + %s32]]
    %s34 = scalar_lea.vmem %s1, %s33
    %v35 = vld [vmem:[%s34] sm:$0x1]
    %v36 = vadd.f32 %v23, %v35
    %s37 = sadd.s32 %s32, 1
    %s38 = sld [smem:[#allocation3 + %s37]]
    %s39 = scalar_lea.vmem %s1, %s38
    %v40 = vld [vmem:[%s39] sm:$0x1]
    %v41 = vadd.f32 %v36, %v40
    %s42 = sadd.s32 %s32, 2
    %s43 = sld [smem:[#allocation3 + %s42]]
    %s44 = scalar_lea.vmem %s1, %s43
    %v45 = vld [vmem:[%s44] sm:$0x1]
    %v46 = vadd.f32 %v41, %v45
    %s47 = sadd.s32 %s32, 3
    %s48 = sld [smem:[#allocation3 + %s47]]
    %s49 = scalar_lea.vmem %s1, %s48
    %v50 = vld [vmem:[%s49] sm:$0x1]
    %v51 = vadd.f32 %v46, %v50
    %s52 = scalar_lea.vmem %s3, %s30
    %vm53 = vcmask 0
    %54 = vst.msk [vmem:[%s52] sm:$0x1] %vm53, %v51
    %s55 = sadd.s32 %s30, 1
    %s56 = sadd.s32 %s22, %s55
    %s57 = smul.u32 %s56, 4
    %s58 = sld [smem:[#allocation3 + %s57]]
    %s59 = scalar_lea.vmem %s1, %s58
    %v60 = vld [vmem:[%s59] sm:$0x1]
    %v61 = vadd.f32 %v23, %v60
    %s62 = sadd.s32 %s57, 1
    %s63 = sld [smem:[#allocation3 + %s62]]
    %s64 = scalar_lea.vmem %s1, %s63
    %v65 = vld [vmem:[%s64] sm:$0x1]
    %v66 = vadd.f32 %v61, %v65
    %s67 = sadd.s32 %s57, 2
    %s68 = sld [smem:[#allocation3 + %s67]]
    %s69 = scalar_lea.vmem %s1, %s68
    %v70 = vld [vmem:[%s69] sm:$0x1]
    %v71 = vadd.f32 %v66, %v70
    %s72 = sadd.s32 %s57, 3
    %s73 = sld [smem:[#allocation3 + %s72]]
    %s74 = scalar_lea.vmem %s1, %s73
    %v75 = vld [vmem:[%s74] sm:$0x1]
    %v76 = vadd.f32 %v71, %v75
    %s77 = scalar_lea.vmem %s3, %s55
    %78 = vst.msk [vmem:[%s77] sm:$0x1] %vm53, %v76
    %s79 = sadd.s32 %s30, 2
    %s80 = sadd.s32 %s22, %s79
    %s81 = smul.u32 %s80, 4
    %s82 = sld [smem:[#allocation3 + %s81]]
    %s83 = scalar_lea.vmem %s1, %s82
    %v84 = vld [vmem:[%s83] sm:$0x1]
    %v85 = vadd.f32 %v23, %v84
    %s86 = sadd.s32 %s81, 1
    %s87 = sld [smem:[#allocation3 + %s86]]
    %s88 = scalar_lea.vmem %s1, %s87
    %v89 = vld [vmem:[%s88] sm:$0x1]
    %v90 = vadd.f32 %v85, %v89
    %s91 = sadd.s32 %s81, 2
    %s92 = sld [smem:[#allocation3 + %s91]]
    %s93 = scalar_lea.vmem %s1, %s92
    %v94 = vld [vmem:[%s93] sm:$0x1]
    %v95 = vadd.f32 %v90, %v94
    %s96 = sadd.s32 %s81, 3
    %s97 = sld [smem:[#allocation3 + %s96]]
    %s98 = scalar_lea.vmem %s1, %s97
    %v99 = vld [vmem:[%s98] sm:$0x1]
    %v100 = vadd.f32 %v95, %v99
    %s101 = scalar_lea.vmem %s3, %s79
    %102 = vst.msk [vmem:[%s101] sm:$0x1] %vm53, %v100
    %s103 = sadd.s32 %s30, 3
    %s104 = sadd.s32 %s22, %s103
    %s105 = smul.u32 %s104, 4
    %s106 = sld [smem:[#allocation3 + %s105]]
    %s107 = scalar_lea.vmem %s1, %s106
    %v108 = vld [vmem:[%s107] sm:$0x1]
    %v109 = vadd.f32 %v23, %v108
    %s110 = sadd.s32 %s105, 1
    %s111 = sld [smem:[#allocation3 + %s110]]
    %s112 = scalar_lea.vmem %s1, %s111
    %v113 = vld [vmem:[%s112] sm:$0x1]
    %v114 = vadd.f32 %v109, %v113
    %s115 = sadd.s32 %s105, 2
    %s116 = sld [smem:[#allocation3 + %s115]]
    %s117 = scalar_lea.vmem %s1, %s116
    %v118 = vld [vmem:[%s117] sm:$0x1]
    %v119 = vadd.f32 %v114, %v118
    %s120 = sadd.s32 %s105, 3
    %s121 = sld [smem:[#allocation3 + %s120]]
    %s122 = scalar_lea.vmem %s1, %s121
    %v123 = vld [vmem:[%s122] sm:$0x1]
    %v124 = vadd.f32 %v119, %v123
    %s125 = scalar_lea.vmem %s3, %s103
    %126 = vst.msk [vmem:[%s125] sm:$0x1] %vm53, %v124
    %s127 = sadd.s32 %s30, 4
    %s128 = sadd.s32 %s22, %s127
    %s129 = smul.u32 %s128, 4
    %s130 = sld [smem:[#allocation3 + %s129]]
    %s131 = scalar_lea.vmem %s1, %s130
    %v132 = vld [vmem:[%s131] sm:$0x1]
    %v133 = vadd.f32 %v23, %v132
    %s134 = sadd.s32 %s129, 1
    %s135 = sld [smem:[#allocation3 + %s134]]
    %s136 = scalar_lea.vmem %s1, %s135
    %v137 = vld [vmem:[%s136] sm:$0x1]
    %v138 = vadd.f32 %v133, %v137
    %s139 = sadd.s32 %s129, 2
    %s140 = sld [smem:[#allocation3 + %s139]]
    %s141 = scalar_lea.vmem %s1, %s140
    %v142 = vld [vmem:[%s141] sm:$0x1]
    %v143 = vadd.f32 %v138, %v142
    %s144 = sadd.s32 %s129, 3
    %s145 = sld [smem:[#allocation3 + %s144]]
    %s146 = scalar_lea.vmem %s1, %s145
    %v147 = vld [vmem:[%s146] sm:$0x1]
    %v148 = vadd.f32 %v143, %v147
    %s149 = scalar_lea.vmem %s3, %s127
    %150 = vst.msk [vmem:[%s149] sm:$0x1] %vm53, %v148
    %s151 = sadd.s32 %s30, 5
    %s152 = sadd.s32 %s22, %s151
    %s153 = smul.u32 %s152, 4
    %s154 = sld [smem:[#allocation3 + %s153]]
    %s155 = scalar_lea.vmem %s1, %s154
    %v156 = vld [vmem:[%s155] sm:$0x1]
    %v157 = vadd.f32 %v23, %v156
    %s158 = sadd.s32 %s153, 1
    %s159 = sld [smem:[#allocation3 + %s158]]
    %s160 = scalar_lea.vmem %s1, %s159
    %v161 = vld [vmem:[%s160] sm:$0x1]
    %v162 = vadd.f32 %v157, %v161
    %s163 = sadd.s32 %s153, 2
    %s164 = sld [smem:[#allocation3 + %s163]]
    %s165 = scalar_lea.vmem %s1, %s164
    %v166 = vld [vmem:[%s165] sm:$0x1]
    %v167 = vadd.f32 %v162, %v166
    %s168 = sadd.s32 %s153, 3
    %s169 = sld [smem:[#allocation3 + %s168]]
    %s170 = scalar_lea.vmem %s1, %s169
    %v171 = vld [vmem:[%s170] sm:$0x1]
    %v172 = vadd.f32 %v167, %v171
    %s173 = scalar_lea.vmem %s3, %s151
    %174 = vst.msk [vmem:[%s173] sm:$0x1] %vm53, %v172
    %s175 = sadd.s32 %s30, 6
    %s176 = sadd.s32 %s22, %s175
    %s177 = smul.u32 %s176, 4
    %s178 = sld [smem:[#allocation3 + %s177]]
    %s179 = scalar_lea.vmem %s1, %s178
    %v180 = vld [vmem:[%s179] sm:$0x1]
    %v181 = vadd.f32 %v23, %v180
    %s182 = sadd.s32 %s177, 1
    %s183 = sld [smem:[#allocation3 + %s182]]
    %s184 = scalar_lea.vmem %s1, %s183
    %v185 = vld [vmem:[%s184] sm:$0x1]
    %v186 = vadd.f32 %v181, %v185
    %s187 = sadd.s32 %s177, 2
    %s188 = sld [smem:[#allocation3 + %s187]]
    %s189 = scalar_lea.vmem %s1, %s188
    %v190 = vld [vmem:[%s189] sm:$0x1]
    %v191 = vadd.f32 %v186, %v190
    %s192 = sadd.s32 %s177, 3
    %s193 = sld [smem:[#allocation3 + %s192]]
    %s194 = scalar_lea.vmem %s1, %s193
    %v195 = vld [vmem:[%s194] sm:$0x1]
    %v196 = vadd.f32 %v191, %v195
    %s197 = scalar_lea.vmem %s3, %s175
    %198 = vst.msk [vmem:[%s197] sm:$0x1] %vm53, %v196
    %s199 = sadd.s32 %s30, 7
    %s200 = sadd.s32 %s22, %s199
    %s201 = smul.u32 %s200, 4
    %s202 = sld [smem:[#allocation3 + %s201]]
    %s203 = scalar_lea.vmem %s1, %s202
    %v204 = vld [vmem:[%s203] sm:$0x1]
    %v205 = vadd.f32 %v23, %v204
    %s206 = sadd.s32 %s201, 1
    %s207 = sld [smem:[#allocation3 + %s206]]
    %s208 = scalar_lea.vmem %s1, %s207
    %v209 = vld [vmem:[%s208] sm:$0x1]
    %v210 = vadd.f32 %v205, %v209
    %s211 = sadd.s32 %s201, 2
    %s212 = sld [smem:[#allocation3 + %s211]]
    %s213 = scalar_lea.vmem %s1, %s212
    %v214 = vld [vmem:[%s213] sm:$0x1]
    %v215 = vadd.f32 %v210, %v214
    %s216 = sadd.s32 %s201, 3
    %s217 = sld [smem:[#allocation3 + %s216]]
    %s218 = scalar_lea.vmem %s1, %s217
    %v219 = vld [vmem:[%s218] sm:$0x1]
    %v220 = vadd.f32 %v215, %v219
    %s221 = scalar_lea.vmem %s3, %s199
    %222 = vst.msk [vmem:[%s221] sm:$0x1] %vm53, %v220
  $region14: #{tpu_custom_call.1} parent=0 // loop_footer
    %s29 = sadd.s32 1, %s25
  $region15: #{tpu_custom_call.1} parent=0 // loop_footer_branch
    %24 = sbr.rel target = $region11
  $region16: #{tpu_custom_call.1} parent=0 // loop_exit
    _
  // Predicated region
  $region17: #{tpu_custom_call.1} parent=0 // pred_check
    _
  $region18: #{tpu_custom_call.1} parent=0 // pred_check_branch
    %224 = sbr.rel (0) target = $region20
  $region19: #{tpu_custom_call.1} parent=0 // pred_region
    _
  $region20: #{tpu_custom_call.1} parent=0 // pred_fallthru
    _
  // Predicated region
  $region21: #{tpu_custom_call.1} parent=0 // pred_check
    _
  $region22: #{tpu_custom_call.1} parent=0 // pred_check_branch
    %226 = sbr.rel (0) target = $region24
  $region23: #{tpu_custom_call.1} parent=0 // pred_region
    _
  $region24: #{tpu_custom_call.1} parent=0 // pred_fallthru
    _

</llo_original>
